<compile_context>
chip_gen: v7x
topology: tpu7x:2x2x1
jax: 0.10.0
libtpu: 0.0.40
codegen_flags: <defaults>
</compile_context>

<pallas_src>
import math

import jax
import jax.numpy as jnp
from jax import lax
from jax.experimental import pallas as pl
from jax.experimental.pallas import tpu as pltpu

HIDDEN_DIM = 256
LN_EPS = 1e-5


def _global_attention_kernel(feats_ref, mi_ref, mj_ref,
                             wqkv_ref, bqkv_ref,
                             gamma_ref, beta_ref,
                             out_ref):
    bblk, n, h = feats_ref.shape

    # Fused Q/K/V projection: bf16(bblk*n, h) @ bf16(h, 3h) -> f32, + f32 bias.
    # The 2-D form is kept (rather than a 3-D dot_general) because Mosaic's batched-dot
    # support targets matching batch dims on both operands; the (bblk, n) -> (bblk*n,)
    # merge is layout-free whenever n % 8 == 0.
    # TODO(synk): if max_node % 8 != 0 becomes common, pad the node axis to 8 in the
    # wrapper so this reshape never forces a sublane relayout.
    x = feats_ref[...].astype(jnp.bfloat16).reshape(bblk * n, h)
    qkv = jnp.dot(x, wqkv_ref[...], preferred_element_type=jnp.float32) + bqkv_ref[...]
    qkv = qkv.reshape(bblk, n, 3 * h)
    q = qkv[:, :, 0 * h:1 * h]      # 1/sqrt(h) score scale already folded in
    k = qkv[:, :, 1 * h:2 * h]
    v = qkv[:, :, 2 * h:3 * h]

    # Scores: contract on the last axis of both q and k (no explicit k transpose),
    # bf16 operands, f32 accumulation.
    scores = jnp.einsum("bnh,bmh->bnm",
                        q.astype(jnp.bfloat16), k.astype(jnp.bfloat16),
                        preferred_element_type=jnp.float32)

    # attention_masks = m_i * m_j ; then mask - 100000 * (1 - mask)
    # (valid pairs get +1 added to the score, exactly as the PyTorch code does).
    am = mi_ref[...] * mj_ref[...]                 # (bblk,n,1)*(bblk,1,n) -> (bblk,n,n)
    scores = scores + (am - 100000.0 * (1.0 - am))

    # Softmax over keys (f32).  The approx reciprocal is a per-row uniform scale, which
    # the following per-row LayerNorm cancels exactly.
    scores = scores - jnp.max(scores, axis=-1, keepdims=True)
    p = jnp.exp(scores)
    p = p * pl.reciprocal(jnp.sum(p, axis=-1, keepdims=True), approx=True)

    # Attention output: bf16 operands on the MXU, f32 accumulation.
    attn = jnp.einsum("bnm,bmh->bnh",
                      p.astype(jnp.bfloat16), v.astype(jnp.bfloat16),
                      preferred_element_type=jnp.float32)

    # LayerNorm over the hidden dim (biased variance, like nn.LayerNorm) + ReLU.
    mean = jnp.mean(attn, axis=-1, keepdims=True)
    centered = attn - mean
    var = jnp.mean(centered * centered, axis=-1, keepdims=True)
    normed = centered * lax.rsqrt(var + LN_EPS)
    normed = normed * gamma_ref[...] + beta_ref[...]
    out_ref[...] = jnp.maximum(normed, 0.0).astype(out_ref.dtype)

    # TODO(synk): for max_node >= ~1024 the (n, n) scores/p tensors start pressing VMEM
    # (especially v7x's 64 MiB); tile the key axis with an online-softmax (flash-style)
    # loop so they never materialize at n x n.


def _tpu_config():
    """Per-generation knobs: (MXU row target, #TensorCores to feed, VMEM budget bytes)."""
    kind = ""
    try:
        kind = jax.devices()[0].device_kind.lower()
    except Exception:
        pass
    if "v2" in kind or "v3" in kind:
        return 128, 1, 12 * 2**20            # small-VMEM generations
    if "v5e" in kind or "v5 lite" in kind or "v5lite" in kind:
        return 128, 1, 100 * 2**20           # v5e: 128-wide MXU, 1 TC, 128 MiB VMEM
    if "v4" in kind or "v5" in kind:
        return 128, 2, 48 * 2**20            # v4 / v5p (megacore), conservative VMEM
    if "v6" in kind:
        return 256, 1, 100 * 2**20           # v6e: 256-wide MXU, 1 TC, 128 MiB VMEM
    if "v7" in kind:
        return 256, 2, 48 * 2**20            # v7x: 2 TCs, 64 MiB physical VMEM
    return 256, 2, 48 * 2**20                # unknown chip: conservative (v7x-like)


def _vmem_bytes_estimate(bblk, n, h):
    """Rough live-VMEM bytes for one grid step (double-buffered I/O + intermediates)."""
    f32, bf16 = 4, 2
    io = 2 * 2 * bblk * n * h * f32                       # feats + out, double-buffered
    weights = 2 * (h * 3 * h * bf16 + 3 * h * f32 + 2 * h * f32)
    qkv = bblk * n * 3 * h * (f32 + bf16)                 # f32 qkv + bf16 operand copies
    attn = bblk * n * h * f32
    scores = bblk * n * n * (2 * f32 + bf16)              # scores, p, bf16 copy of p
    masks = 2 * 2 * bblk * (n * 128 + 8 * n) * f32        # lane/sublane-padded mask blocks
    return io + weights + qkv + attn + scores + masks


def _choose_blocking(batch, max_node, hidden, mxu_rows, n_tc, vmem_budget):
    """Pick batch elements per grid step and the (possibly padded) batch size."""
    bblk = max(1, pl.cdiv(mxu_rows, max_node))     # fill an MXU pass with bblk*max_node rows
    bblk = min(bblk, batch)
    if n_tc >= 2 and batch >= 2:
        bblk = min(bblk, pl.cdiv(batch, 2))        # keep >=2 grid steps only on multi-TC chips
    while bblk > 1 and _vmem_bytes_estimate(bblk, max_node, hidden) > vmem_budget:
        bblk -= 1
    grid = pl.cdiv(batch, bblk)
    if n_tc >= 2 and grid > 1 and grid % 2 == 1:
        grid += 1                                  # even grid -> both TensorCores balanced
    return bblk, grid * bblk


def prepare_params(params):
    """Fold PyTorch-convention params into the fused kernel layout: pre-transpose W
    (out,in)->(in,out), fuse Q/K/V along the output axis, fold the 1/sqrt(H) score scale
    into the Q slice, and store the fused weight in bf16 (MXU-native operand)."""
    scale = 1.0 / math.sqrt(HIDDEN_DIM)
    wqkv = jnp.concatenate(
        [params["wq"].T * scale, params["wk"].T, params["wv"].T], axis=1)   # (H, 3H)
    bqkv = jnp.concatenate(
        [params["bq"] * scale, params["bk"], params["bv"]], axis=1)         # (1, 3H)
    return {"wqkv": wqkv.astype(jnp.bfloat16),
            "bqkv": bqkv.astype(jnp.float32),    # bias is added to the f32 accumulator
            "gamma": params["gamma"].astype(jnp.float32),
            "beta": params["beta"].astype(jnp.float32)}


@jax.jit
def global_attention_layer(feats, masks, prep):
    """feats: (B, N, H) f32, masks: (B, N) {0,1} float, prep: output of prepare_params."""
    B, N, H = feats.shape
    assert H == HIDDEN_DIM
    mxu_rows, n_tc, vmem_budget = _tpu_config()
    bblk, padded_b = _choose_blocking(B, N, H, mxu_rows, n_tc, vmem_budget)

    masks_f = masks.astype(jnp.float32)
    if padded_b != B:                      # pad awkward batch sizes with fully-masked rows
        feats = jnp.pad(feats, ((0, padded_b - B), (0, 0), (0, 0)))
        masks_f = jnp.pad(masks_f, ((0, padded_b - B), (0, 0)))

    # The mask is passed pre-shaped in both layouts.  Building the (N, 1) query layout
    # in-kernel from a single (B, N) block needs a lane<->sublane relayout (same reason
    # splash attention replicates segment ids host-side); mask traffic is <= 1/128 of
    # feats traffic, so the duplicate DMA is negligible.
    mi = masks_f.reshape(padded_b, N, 1)   # query layout (broadcast over keys)
    mj = masks_f.reshape(padded_b, 1, N)   # key layout, lane-dense (broadcast over queries)

    cp_kwargs = dict(dimension_semantics=("parallel",))
    est = _vmem_bytes_estimate(bblk, N, H)
    if est > 16 * 2**20:                   # raise the scoped-VMEM limit only when it would bind
        cp_kwargs["vmem_limit_bytes"] = int(min(vmem_budget, max(est * 5 // 4, 32 * 2**20)))

    batch_blk = lambda b: (b, 0, 0)
    fixed2d = lambda b: (0, 0)

    out = pl.pallas_call(
        _global_attention_kernel,
        out_shape=jax.ShapeDtypeStruct((padded_b, N, H), jnp.float32),
        grid=(padded_b // bblk,),
        in_specs=[
            pl.BlockSpec((bblk, N, H), batch_blk),     # feats
            pl.BlockSpec((bblk, N, 1), batch_blk),     # mask, query layout
            pl.BlockSpec((bblk, 1, N), batch_blk),     # mask, key layout (lane-dense)
            pl.BlockSpec((H, 3 * H), fixed2d),         # fused, pre-transposed bf16 W_qkv
            pl.BlockSpec((1, 3 * H), fixed2d),         # fused f32 b_qkv
            pl.BlockSpec((1, H), fixed2d),             # LayerNorm gamma
            pl.BlockSpec((1, H), fixed2d),             # LayerNorm beta
        ],
        out_specs=pl.BlockSpec((bblk, N, H), batch_blk),
        compiler_params=pltpu.CompilerParams(**cp_kwargs),
    )(feats, mi, mj, prep["wqkv"], prep["bqkv"], prep["gamma"], prep["beta"])
    return out[:B]


def init_params(key):
    """Deterministic synthetic parameters matching nn.Linear / nn.LayerNorm shapes."""
    keys = jax.random.split(key, 6)
    bound = 1.0 / math.sqrt(HIDDEN_DIM)
    u = lambda k, shape: jax.random.uniform(k, shape, jnp.float32, -bound, bound)
    return {
        "wq": u(keys[0], (HIDDEN_DIM, HIDDEN_DIM)),
        "bq": u(keys[1], (1, HIDDEN_DIM)),
        "wk": u(keys[2], (HIDDEN_DIM, HIDDEN_DIM)),
        "bk": u(keys[3], (1, HIDDEN_DIM)),
        "wv": u(keys[4], (HIDDEN_DIM, HIDDEN_DIM)),
        "bv": u(keys[5], (1, HIDDEN_DIM)),
        "gamma": jnp.ones((1, HIDDEN_DIM), jnp.float32),
        "beta": jnp.zeros((1, HIDDEN_DIM), jnp.float32),
    }


def _reference(feats, masks, p):
    """Pure-JAX f32 reference mirroring the PyTorch forward, for a sanity check."""
    q = feats @ p["wq"].T + p["bq"][0]
    k = feats @ p["wk"].T + p["bk"][0]
    v = feats @ p["wv"].T + p["bv"][0]
    scores = jnp.einsum("bnh,bmh->bnm", q, k) / math.sqrt(HIDDEN_DIM)
    am = masks[:, :, None] * masks[:, None, :]
    am = am - 100000.0 * (1.0 - am)
    scores = jax.nn.softmax(scores + am, axis=-1)
    out = jnp.einsum("bnm,bmh->bnh", scores, v)
    mean = out.mean(-1, keepdims=True)
    var = ((out - mean) ** 2).mean(-1, keepdims=True)
    out = (out - mean) / jnp.sqrt(var + LN_EPS) * p["gamma"][0] + p["beta"][0]
    return jnp.maximum(out, 0.0)


if __name__ == "__main__":
    key = jax.random.PRNGKey(0)
    kp, kf, km = jax.random.split(key, 3)

    batch, max_node = 2, 8
    params = init_params(kp)
    prep = prepare_params(params)
    feats = jax.random.normal(kf, (batch, max_node, HIDDEN_DIM), jnp.float32)
    masks = (jax.random.uniform(km, (batch, max_node)) > 0.3).astype(jnp.float32)
    # guarantee at least one valid node per batch element
    masks = masks.at[:, 0].set(1.0)

    out = jax.block_until_ready(global_attention_layer(feats, masks, prep))
    ref = _reference(feats, masks, params)

    assert out.shape == (batch, max_node, HIDDEN_DIM)
    # bf16 MXU operands (weights/activations/probs) with f32 accumulation introduce
    # ~1e-2 drift vs the pure-f32 reference once LayerNorm's 1/std rescaling amplifies
    # the per-element rounding noise; 4e-2 bounds that while still catching real bugs.
    assert bool(jnp.allclose(out, ref, atol=4e-2, rtol=4e-2)), "mismatch vs f32 reference"
    print("KERNEL_OK")
</pallas_src>

<mosaic_0001>
module attributes {stable_mosaic.version = 11 : i64} {
  func.func @_global_attention_kernel(%arg0: i32, %arg1: memref<1x8x256xf32, #tpu.memory_space<vmem>>, %arg2: memref<1x8x1xf32, #tpu.memory_space<vmem>>, %arg3: memref<1x1x8xf32, #tpu.memory_space<vmem>>, %arg4: memref<256x768xbf16, #tpu.memory_space<vmem>>, %arg5: memref<1x768xf32, #tpu.memory_space<vmem>>, %arg6: memref<1x256xf32, #tpu.memory_space<vmem>>, %arg7: memref<1x256xf32, #tpu.memory_space<vmem>>, %arg8: memref<1x8x256xf32, #tpu.memory_space<vmem>>) attributes {dimension_semantics = [#tpu.dimension_semantics<parallel>], iteration_bounds = array<i64: 2>, scalar_prefetch = 0 : i64, scratch_operands = 0 : i64, tpu.core_type = #tpu.core_type<tc>, window_params = [{transform_indices = @transform_0, window_bounds = array<i64: 1, 8, 256>}, {transform_indices = @transform_1, window_bounds = array<i64: 1, 8, 1>}, {transform_indices = @transform_2, window_bounds = array<i64: 1, 1, 8>}, {pipeline_mode = #tpu.pipeline_mode<synchronous>, transform_indices = @transform_3, window_bounds = array<i64: 256, 768>}, {pipeline_mode = #tpu.pipeline_mode<synchronous>, transform_indices = @transform_4, window_bounds = array<i64: 1, 768>}, {pipeline_mode = #tpu.pipeline_mode<synchronous>, transform_indices = @transform_5, window_bounds = array<i64: 1, 256>}, {pipeline_mode = #tpu.pipeline_mode<synchronous>, transform_indices = @transform_6, window_bounds = array<i64: 1, 256>}, {transform_indices = @transform_7, window_bounds = array<i64: 1, 8, 256>}]} {
    %c0 = arith.constant 0 : index
    %c0_0 = arith.constant 0 : index
    %c0_1 = arith.constant 0 : index
    %0 = vector.load %arg1[%c0, %c0_0, %c0_1] : memref<1x8x256xf32, #tpu.memory_space<vmem>>, vector<1x8x256xf32>
    %1 = arith.truncf %0 : vector<1x8x256xf32> to vector<1x8x256xbf16>
    %2 = vector.shape_cast %1 : vector<1x8x256xbf16> to vector<8x256xbf16>
    %c0_2 = arith.constant 0 : index
    %c0_3 = arith.constant 0 : index
    %3 = vector.load %arg4[%c0_2, %c0_3] : memref<256x768xbf16, #tpu.memory_space<vmem>>, vector<256x768xbf16>
    %cst = arith.constant dense<0.000000e+00> : vector<8x768xf32>
    %4 = tpu.matmul %2, %3, %cst {dimension_numbers = #tpu.dot_dimension_numbers<[1], [0], [0], [1], [0, 0, 1, 1], [], []>} : vector<8x256xbf16>, vector<256x768xbf16>, vector<8x768xf32> -> vector<8x768xf32>
    %c0_4 = arith.constant 0 : index
    %c0_5 = arith.constant 0 : index
    %5 = vector.load %arg5[%c0_4, %c0_5] : memref<1x768xf32, #tpu.memory_space<vmem>>, vector<1x768xf32>
    %6 = vector.broadcast %5 : vector<1x768xf32> to vector<8x768xf32>
    %7 = arith.addf %4, %6 : vector<8x768xf32>
    %8 = vector.shape_cast %7 : vector<8x768xf32> to vector<1x8x768xf32>
    %9 = vector.extract_strided_slice %8 {offsets = [0, 0, 0], sizes = [1, 8, 256], strides = [1, 1, 1]} : vector<1x8x768xf32> to vector<1x8x256xf32>
    %10 = vector.extract_strided_slice %8 {offsets = [0, 0, 256], sizes = [1, 8, 256], strides = [1, 1, 1]} : vector<1x8x768xf32> to vector<1x8x256xf32>
    %11 = vector.extract_strided_slice %8 {offsets = [0, 0, 512], sizes = [1, 8, 256], strides = [1, 1, 1]} : vector<1x8x768xf32> to vector<1x8x256xf32>
    %12 = arith.truncf %9 : vector<1x8x256xf32> to vector<1x8x256xbf16>
    %13 = arith.truncf %10 : vector<1x8x256xf32> to vector<1x8x256xbf16>
    "tpu.trace_start"() <{level = 10 : i32, message = "bnh,bmh->bnm"}> : () -> ()
    %cst_6 = arith.constant dense<0.000000e+00> : vector<1x8x8xf32>
    %14 = tpu.matmul %12, %13, %cst_6 {dimension_numbers = #tpu.dot_dimension_numbers<[2], [2], [1], [1], [0, 0, 0, 1, 1, 1], [0], [0]>} : vector<1x8x256xbf16>, vector<1x8x256xbf16>, vector<1x8x8xf32> -> vector<1x8x8xf32>
    "tpu.trace_stop"() : () -> ()
    %c0_7 = arith.constant 0 : index
    %c0_8 = arith.constant 0 : index
    %c0_9 = arith.constant 0 : index
    %15 = vector.load %arg2[%c0_7, %c0_8, %c0_9] : memref<1x8x1xf32, #tpu.memory_space<vmem>>, vector<1x8x1xf32>
    %c0_10 = arith.constant 0 : index
    %c0_11 = arith.constant 0 : index
    %c0_12 = arith.constant 0 : index
    %16 = vector.load %arg3[%c0_10, %c0_11, %c0_12] : memref<1x1x8xf32, #tpu.memory_space<vmem>>, vector<1x1x8xf32>
    %17 = vector.broadcast %15 : vector<1x8x1xf32> to vector<1x8x8xf32>
    %18 = vector.broadcast %16 : vector<1x1x8xf32> to vector<1x8x8xf32>
    %19 = arith.mulf %17, %18 : vector<1x8x8xf32>
    %cst_13 = arith.constant 1.000000e+00 : f32
    %20 = vector.broadcast %cst_13 : f32 to vector<1x8x8xf32>
    %21 = arith.subf %20, %19 : vector<1x8x8xf32>
    %cst_14 = arith.constant 1.000000e+05 : f32
    %22 = vector.broadcast %cst_14 : f32 to vector<1x8x8xf32>
    %23 = arith.mulf %22, %21 : vector<1x8x8xf32>
    %24 = arith.subf %19, %23 : vector<1x8x8xf32>
    %25 = arith.addf %14, %24 : vector<1x8x8xf32>
    %cst_15 = arith.constant dense<0xFF800000> : vector<1x8xf32>
    %26 = vector.multi_reduction <maximumf>, %25, %cst_15 [2] : vector<1x8x8xf32> to vector<1x8xf32>
    %27 = vector.shape_cast %26 : vector<1x8xf32> to vector<1x8x1xf32>
    %28 = vector.broadcast %27 : vector<1x8x1xf32> to vector<1x8x8xf32>
    %29 = arith.subf %25, %28 : vector<1x8x8xf32>
    %30 = math.exp %29 : vector<1x8x8xf32>
    %cst_16 = arith.constant dense<0.000000e+00> : vector<1x8xf32>
    %31 = vector.multi_reduction <add>, %30, %cst_16 [2] : vector<1x8x8xf32> to vector<1x8xf32>
    %32 = vector.shape_cast %31 : vector<1x8xf32> to vector<1x8x1xf32>
    %33 = tpu.reciprocal %32 {approx = true} : vector<1x8x1xf32> -> vector<1x8x1xf32>
    %34 = vector.broadcast %33 : vector<1x8x1xf32> to vector<1x8x8xf32>
    %35 = arith.mulf %30, %34 : vector<1x8x8xf32>
    %36 = arith.truncf %35 : vector<1x8x8xf32> to vector<1x8x8xbf16>
    %37 = arith.truncf %11 : vector<1x8x256xf32> to vector<1x8x256xbf16>
    "tpu.trace_start"() <{level = 10 : i32, message = "bnm,bmh->bnh"}> : () -> ()
    %cst_17 = arith.constant dense<0.000000e+00> : vector<1x8x256xf32>
    %38 = tpu.matmul %36, %37, %cst_17 {dimension_numbers = #tpu.dot_dimension_numbers<[2], [1], [1], [2], [0, 0, 0, 1, 1, 2], [0], [0]>} : vector<1x8x8xbf16>, vector<1x8x256xbf16>, vector<1x8x256xf32> -> vector<1x8x256xf32>
    "tpu.trace_stop"() : () -> ()
    %cst_18 = arith.constant dense<0.000000e+00> : vector<1x8xf32>
    %39 = vector.multi_reduction <add>, %38, %cst_18 [2] : vector<1x8x256xf32> to vector<1x8xf32>
    %40 = vector.shape_cast %39 : vector<1x8xf32> to vector<1x8x1xf32>
    %cst_19 = arith.constant 2.560000e+02 : f32
    %41 = vector.broadcast %cst_19 : f32 to vector<1x8x1xf32>
    %42 = arith.divf %40, %41 : vector<1x8x1xf32>
    %43 = vector.broadcast %42 : vector<1x8x1xf32> to vector<1x8x256xf32>
    %44 = arith.subf %38, %43 : vector<1x8x256xf32>
    %45 = arith.mulf %44, %44 : vector<1x8x256xf32>
    %cst_20 = arith.constant dense<0.000000e+00> : vector<1x8xf32>
    %46 = vector.multi_reduction <add>, %45, %cst_20 [2] : vector<1x8x256xf32> to vector<1x8xf32>
    %47 = vector.shape_cast %46 : vector<1x8xf32> to vector<1x8x1xf32>
    %cst_21 = arith.constant 2.560000e+02 : f32
    %48 = vector.broadcast %cst_21 : f32 to vector<1x8x1xf32>
    %49 = arith.divf %47, %48 : vector<1x8x1xf32>
    %cst_22 = arith.constant 9.99999974E-6 : f32
    %50 = vector.broadcast %cst_22 : f32 to vector<1x8x1xf32>
    %51 = arith.addf %49, %50 : vector<1x8x1xf32>
    %52 = math.rsqrt %51 : vector<1x8x1xf32>
    %53 = vector.broadcast %52 : vector<1x8x1xf32> to vector<1x8x256xf32>
    %54 = arith.mulf %44, %53 : vector<1x8x256xf32>
    %c0_23 = arith.constant 0 : index
    %c0_24 = arith.constant 0 : index
    %55 = vector.load %arg6[%c0_23, %c0_24] : memref<1x256xf32, #tpu.memory_space<vmem>>, vector<1x256xf32>
    %56 = vector.shape_cast %55 : vector<1x256xf32> to vector<1x1x256xf32>
    %57 = vector.broadcast %56 : vector<1x1x256xf32> to vector<1x8x256xf32>
    %58 = arith.mulf %54, %57 : vector<1x8x256xf32>
    %c0_25 = arith.constant 0 : index
    %c0_26 = arith.constant 0 : index
    %59 = vector.load %arg7[%c0_25, %c0_26] : memref<1x256xf32, #tpu.memory_space<vmem>>, vector<1x256xf32>
    %60 = vector.shape_cast %59 : vector<1x256xf32> to vector<1x1x256xf32>
    %61 = vector.broadcast %60 : vector<1x1x256xf32> to vector<1x8x256xf32>
    %62 = arith.addf %58, %61 : vector<1x8x256xf32>
    %cst_27 = arith.constant 0.000000e+00 : f32
    %63 = vector.broadcast %cst_27 : f32 to vector<1x8x256xf32>
    %64 = arith.maximumf %62, %63 : vector<1x8x256xf32>
    %c0_28 = arith.constant 0 : index
    %c0_29 = arith.constant 0 : index
    %c0_30 = arith.constant 0 : index
    %65 = vector.load %arg8[%c0_28, %c0_29, %c0_30] : memref<1x8x256xf32, #tpu.memory_space<vmem>>, vector<1x8x256xf32>
    tpu.vector_store %arg8[%c0_28, %c0_29, %c0_30], %64 {strides = array<i32>} : memref<1x8x256xf32, #tpu.memory_space<vmem>>, vector<1x8x256xf32>,
    return
  }
  func.func @transform_0(%arg0: i32) -> (i32, i32, i32) {
    %c0_i32 = arith.constant 0 : i32
    %c0_i32_0 = arith.constant 0 : i32
    %c0_i32_1 = arith.constant 0 : i32
    return %arg0, %c0_i32, %c0_i32_0 : i32, i32, i32
  }
  func.func @transform_1(%arg0: i32) -> (i32, i32, i32) {
    %c0_i32 = arith.constant 0 : i32
    %c0_i32_0 = arith.constant 0 : i32
    %c0_i32_1 = arith.constant 0 : i32
    return %arg0, %c0_i32, %c0_i32_0 : i32, i32, i32
  }
  func.func @transform_2(%arg0: i32) -> (i32, i32, i32) {
    %c0_i32 = arith.constant 0 : i32
    %c0_i32_0 = arith.constant 0 : i32
    %c0_i32_1 = arith.constant 0 : i32
    return %arg0, %c0_i32, %c0_i32_0 : i32, i32, i32
  }
  func.func @transform_3(%arg0: i32) -> (i32, i32) {
    %c0_i32 = arith.constant 0 : i32
    %c0_i32_0 = arith.constant 0 : i32
    %c0_i32_1 = arith.constant 0 : i32
    return %c0_i32, %c0_i32_0 : i32, i32
  }
  func.func @transform_4(%arg0: i32) -> (i32, i32) {
    %c0_i32 = arith.constant 0 : i32
    %c0_i32_0 = arith.constant 0 : i32
    %c0_i32_1 = arith.constant 0 : i32
    return %c0_i32, %c0_i32_0 : i32, i32
  }
  func.func @transform_5(%arg0: i32) -> (i32, i32) {
    %c0_i32 = arith.constant 0 : i32
    %c0_i32_0 = arith.constant 0 : i32
    %c0_i32_1 = arith.constant 0 : i32
    return %c0_i32, %c0_i32_0 : i32, i32
  }
  func.func @transform_6(%arg0: i32) -> (i32, i32) {
    %c0_i32 = arith.constant 0 : i32
    %c0_i32_0 = arith.constant 0 : i32
    %c0_i32_1 = arith.constant 0 : i32
    return %c0_i32, %c0_i32_0 : i32, i32
  }
  func.func @transform_7(%arg0: i32) -> (i32, i32, i32) {
    %c0_i32 = arith.constant 0 : i32
    %c0_i32_0 = arith.constant 0 : i32
    %c0_i32_1 = arith.constant 0 : i32
    return %arg0, %c0_i32, %c0_i32_0 : i32, i32, i32
  }
}

</mosaic_0001>

<llo_original>
// kernel: global_attention_layer.1
$region0: #{global_attention_layer.1}
  #allocation0 [shape = 'u32[]', space=smem, size = 0x4, offset = 0x4, fixed_abs, tag = 'smem constant byte address 0x4 - core index']
  #allocation1 [shape = 'u32[144,128]{1,0:T(1,128)}', space=vmem, size = 0x12000, scoped, tag = 'internal scratch']
  %s0 = inlined_call_operand.hbm [shape: f32[2,8,256], index: 0, kind: input, shape index: {}]
  %s1 = inlined_call_operand.vmem [shape: f32[2,8,1], index: 1, kind: input, shape index: {}]
  %s2 = inlined_call_operand.vmem [shape: f32[2,1,8], index: 2, kind: input, shape index: {}]
  %s3 = inlined_call_operand.hbm [shape: bf16[256,768], index: 3, kind: input, shape index: {}]
  %s4 = inlined_call_operand.vmem [shape: f32[1,768], index: 4, kind: input, shape index: {}]
  %s5 = inlined_call_operand.vmem [shape: f32[1,256], index: 5, kind: input, shape index: {}]
  %s6 = inlined_call_operand.vmem [shape: f32[1,256], index: 6, kind: input, shape index: {}]
  %s7 = inlined_call_operand.hbm [shape: f32[2,8,256], index: 7, kind: output, shape index: {}]
  %s8 = sld [smem:[#allocation0]]
  $region69: #{global_attention_layer.1} parent=0
    _
  %s10 = ssub.s32 1, %s8
  %s11 = scalar_select 0, %s10, %s8
  $region1: #{global_attention_layer.1} parent=0
    #allocation2 [shape = 'u8[16384]{0}', space=vmem, size = 0x4000, scoped, tag = 'input window, operand 0']
    #allocation3 [shape = 's32[2]{0}', space=sflag, size = 0x8, scoped, tag = 'scoped memory for global_attention_layer.1']
    #allocation4 [shape = 's32[2]{0}', space=sflag, size = 0x8, scoped, tag = 'scoped memory for global_attention_layer.1']
    #allocation5 [shape = 'u8[393216]{0}', space=vmem, size = 0x60000, scoped, tag = 'input window, operand 3, single buffered']
    #allocation6 [shape = 's32[1]{0}', space=sflag, size = 0x4, scoped, tag = 'scoped memory for global_attention_layer.1']
    #allocation7 [shape = 'u8[16384]{0}', space=vmem, size = 0x4000, scoped, tag = 'output window, operand 0']
    %12 = vsyncpa [#allocation3], 0
    %s13 = scalar_lea.sflag [#allocation3], 1
    %14 = vsyncpa %s13, 0
    %15 = vsyncpa [#allocation6], 0
    %16 = vsyncpa [#allocation4], 0
    %s17 = scalar_lea.sflag [#allocation4], 1
    %18 = vsyncpa %s17, 0
    loop: start=0, step=1, limit=4
    $region2: #{global_attention_layer.1} parent=1 // loop_pre_header
      _
    $region3: #{global_attention_layer.1} parent=1 // loop_header
      %s20 = sphi 0, %s24
      %p21 = scmp.ge.s32.totalorder %s20, 4
      %s30 = sphi 0, %s32
      %s33 = sphi 0, %s30
      %s34 = sphi 0, %s33
      %s50 = sphi 0, %s34
      %s56 = sphi 0, %s58
      %s59 = sphi 0, %s56
      %s60 = sphi 0, %s59
      %s76 = sphi 0, %s60
      %s82 = sphi 0, %s84
      %s85 = sphi 0, %s82
      %s86 = sphi 0, %s85
      %s102 = sphi 0, %s86
      %s106 = sphi 0, %s106
      %s108 = sphi 0, %s106
      %s109 = sphi 0, %s108
      %s123 = sphi 0, %s109
      %s127 = sphi 0, %s127
      %s129 = sphi 0, %s127
      %s130 = sphi 0, %s129
      %s144 = sphi 0, %s130
      %s148 = sphi 0, %s148
      %s150 = sphi 0, %s148
      %s151 = sphi 0, %s150
      %s165 = sphi 0, %s151
      %s169 = sphi 0, %s169
      %s171 = sphi 0, %s169
      %s172 = sphi 0, %s171
      %s186 = sphi 0, %s172
      %s192 = sphi 0, %s194
      %s195 = sphi 0, %s192
      %s196 = sphi 0, %s195
      %s212 = sphi 0, %s196
    $region4: #{global_attention_layer.1} parent=1 // loop_header_branch
      %23 = sbr.rel (%p21) target = $region8
    $region5: #{global_attention_layer.1} parent=1 // loop_body
      %s25 = ssub.s32 %s20, 1
      %s26 = ssub.s32 %s20, 2
      %s27 = sadd.s32 %s20, 1
      %s28 = ssub.s32 %s20, %s27
      %p29 = scmp.eq.s32.totalorder %s28, 0
      %s31 = sadd.s32 %s30, 1
      %s32 = scalar_select %p29, %s30, %s31
      %p35 = pneg %p29
      %p36 = scmp.eq.s32.totalorder %s20, 1
      %p37 = por %p35, %p36
      %p38 = scmp.ne.s32.totalorder %s30, %s33
      %p39 = scmp.eq.s32.totalorder %s20, 0
      %p40 = por %p38, %p39
      %p41 = scmp.ne.s32.totalorder %s30, %s33
      %p42 = scmp.eq.s32.totalorder %s25, 1
      %p43 = por %p41, %p42
      %p44 = scmp.ne.s32.totalorder %s33, %s34
      %p45 = scmp.eq.s32.totalorder %s25, 0
      %p46 = por %p44, %p45
      %p47 = scmp.ne.s32.totalorder %s33, %s34
      %p48 = scmp.eq.s32.totalorder %s26, 1
      %p49 = por %p47, %p48
      %p51 = scmp.ne.s32.totalorder %s34, %s50
      %p52 = scmp.eq.s32.totalorder %s26, 0
      %p53 = por %p51, %p52
      %s54 = ssub.s32 %s20, %s27
      %p55 = scmp.eq.s32.totalorder %s54, 0
      %s57 = sadd.s32 %s56, 1
      %s58 = scalar_select %p55, %s56, %s57
      %p61 = pneg %p55
      %p62 = scmp.eq.s32.totalorder %s20, 1
      %p63 = por %p61, %p62
      %p64 = scmp.ne.s32.totalorder %s56, %s59
      %p65 = scmp.eq.s32.totalorder %s20, 0
      %p66 = por %p64, %p65
      %p67 = scmp.ne.s32.totalorder %s56, %s59
      %p68 = scmp.eq.s32.totalorder %s25, 1
      %p69 = por %p67, %p68
      %p70 = scmp.ne.s32.totalorder %s59, %s60
      %p71 = scmp.eq.s32.totalorder %s25, 0
      %p72 = por %p70, %p71
      %p73 = scmp.ne.s32.totalorder %s59, %s60
      %p74 = scmp.eq.s32.totalorder %s26, 1
      %p75 = por %p73, %p74
      %p77 = scmp.ne.s32.totalorder %s60, %s76
      %p78 = scmp.eq.s32.totalorder %s26, 0
      %p79 = por %p77, %p78
      %s80 = ssub.s32 %s20, %s27
      %p81 = scmp.eq.s32.totalorder %s80, 0
      %s83 = sadd.s32 %s82, 1
      %s84 = scalar_select %p81, %s82, %s83
      %p87 = pneg %p81
      %p88 = scmp.eq.s32.totalorder %s20, 1
      %p89 = por %p87, %p88
      %p90 = scmp.ne.s32.totalorder %s82, %s85
      %p91 = scmp.eq.s32.totalorder %s20, 0
      %p92 = por %p90, %p91
      %p93 = scmp.ne.s32.totalorder %s82, %s85
      %p94 = scmp.eq.s32.totalorder %s25, 1
      %p95 = por %p93, %p94
      %p96 = scmp.ne.s32.totalorder %s85, %s86
      %p97 = scmp.eq.s32.totalorder %s25, 0
      %p98 = por %p96, %p97
      %p99 = scmp.ne.s32.totalorder %s85, %s86
      %p100 = scmp.eq.s32.totalorder %s26, 1
      %p101 = por %p99, %p100
      %p103 = scmp.ne.s32.totalorder %s86, %s102
      %p104 = scmp.eq.s32.totalorder %s26, 0
      %p105 = por %p103, %p104
      %s107 = sadd.s32 %s106, 1
      %p110 = scmp.eq.s32.totalorder %s20, 1
      %p111 = scmp.ne.s32.totalorder %s106, %s108
      %p112 = scmp.eq.s32.totalorder %s20, 0
      %p113 = por %p111, %p112
      %p114 = scmp.ne.s32.totalorder %s106, %s108
      %p115 = scmp.eq.s32.totalorder %s25, 1
      %p116 = por %p114, %p115
      %p117 = scmp.ne.s32.totalorder %s108, %s109
      %p118 = scmp.eq.s32.totalorder %s25, 0
      %p119 = por %p117, %p118
      %p120 = scmp.ne.s32.totalorder %s108, %s109
      %p121 = scmp.eq.s32.totalorder %s26, 1
      %p122 = por %p120, %p121
      %p124 = scmp.ne.s32.totalorder %s109, %s123
      %p125 = scmp.eq.s32.totalorder %s26, 0
      %p126 = por %p124, %p125
      %s128 = sadd.s32 %s127, 1
      %p131 = scmp.eq.s32.totalorder %s20, 1
      %p132 = scmp.ne.s32.totalorder %s127, %s129
      %p133 = scmp.eq.s32.totalorder %s20, 0
      %p134 = por %p132, %p133
      %p135 = scmp.ne.s32.totalorder %s127, %s129
      %p136 = scmp.eq.s32.totalorder %s25, 1
      %p137 = por %p135, %p136
      %p138 = scmp.ne.s32.totalorder %s129, %s130
      %p139 = scmp.eq.s32.totalorder %s25, 0
      %p140 = por %p138, %p139
      %p141 = scmp.ne.s32.totalorder %s129, %s130
      %p142 = scmp.eq.s32.totalorder %s26, 1
      %p143 = por %p141, %p142
      %p145 = scmp.ne.s32.totalorder %s130, %s144
      %p146 = scmp.eq.s32.totalorder %s26, 0
      %p147 = por %p145, %p146
      %s149 = sadd.s32 %s148, 1
      %p152 = scmp.eq.s32.totalorder %s20, 1
      %p153 = scmp.ne.s32.totalorder %s148, %s150
      %p154 = scmp.eq.s32.totalorder %s20, 0
      %p155 = por %p153, %p154
      %p156 = scmp.ne.s32.totalorder %s148, %s150
      %p157 = scmp.eq.s32.totalorder %s25, 1
      %p158 = por %p156, %p157
      %p159 = scmp.ne.s32.totalorder %s150, %s151
      %p160 = scmp.eq.s32.totalorder %s25, 0
      %p161 = por %p159, %p160
      %p162 = scmp.ne.s32.totalorder %s150, %s151
      %p163 = scmp.eq.s32.totalorder %s26, 1
      %p164 = por %p162, %p163
      %p166 = scmp.ne.s32.totalorder %s151, %s165
      %p167 = scmp.eq.s32.totalorder %s26, 0
      %p168 = por %p166, %p167
      %s170 = sadd.s32 %s169, 1
      %p173 = scmp.eq.s32.totalorder %s20, 1
      %p174 = scmp.ne.s32.totalorder %s169, %s171
      %p175 = scmp.eq.s32.totalorder %s20, 0
      %p176 = por %p174, %p175
      %p177 = scmp.ne.s32.totalorder %s169, %s171
      %p178 = scmp.eq.s32.totalorder %s25, 1
      %p179 = por %p177, %p178
      %p180 = scmp.ne.s32.totalorder %s171, %s172
      %p181 = scmp.eq.s32.totalorder %s25, 0
      %p182 = por %p180, %p181
      %p183 = scmp.ne.s32.totalorder %s171, %s172
      %p184 = scmp.eq.s32.totalorder %s26, 1
      %p185 = por %p183, %p184
      %p187 = scmp.ne.s32.totalorder %s172, %s186
      %p188 = scmp.eq.s32.totalorder %s26, 0
      %p189 = por %p187, %p188
      %s190 = ssub.s32 %s20, %s27
      %p191 = scmp.eq.s32.totalorder %s190, 0
      %s193 = sadd.s32 %s192, 1
      %s194 = scalar_select %p191, %s192, %s193
      %p197 = pneg %p191
      %p198 = scmp.eq.s32.totalorder %s20, 1
      %p199 = por %p197, %p198
      %p200 = scmp.ne.s32.totalorder %s192, %s195
      %p201 = scmp.eq.s32.totalorder %s20, 0
      %p202 = por %p200, %p201
      %p203 = scmp.ne.s32.totalorder %s192, %s195
      %p204 = scmp.eq.s32.totalorder %s25, 1
      %p205 = por %p203, %p204
      %p206 = scmp.ne.s32.totalorder %s195, %s196
      %p207 = scmp.eq.s32.totalorder %s25, 0
      %p208 = por %p206, %p207
      %p209 = scmp.ne.s32.totalorder %s195, %s196
      %p210 = scmp.eq.s32.totalorder %s26, 1
      %p211 = por %p209, %p210
      %p213 = scmp.ne.s32.totalorder %s196, %s212
      %p214 = scmp.eq.s32.totalorder %s26, 0
      %p215 = por %p213, %p214
      %p216 = scmp.le.s32.totalorder 1, %s20
      %p217 = scmp.lt.s32.totalorder %s20, 3
      %p218 = pnand %p216, %p217
      %p219 = pneg %p218
      // Predicated region
      $region9: #{global_attention_layer.1} parent=5 // pred_check
        _
      $region10: #{global_attention_layer.1} parent=5 // pred_check_branch
        %221 = sbr.rel (%p218) target = $region12
      $region11: #{global_attention_layer.1} parent=5 // pred_region
        %s222 = ssub.s32 %s20, 1
        // Predicated region
        $region13: #{global_attention_layer.1} parent=11 // pred_check
          %p223 = pneg %p119
        $region14: #{global_attention_layer.1} parent=11 // pred_check_branch
          %225 = sbr.rel (%p223) target = $region16
        $region15: #{global_attention_layer.1} parent=11 // pred_region
          %s227 = ssub.s32 12288, 12288
          %228 = vsyncadd [#allocation6], %s227
          %s229 = sshll.u32 [#allocation5], 4
          %s230 = int_to_ptr.vmem [resolvable:$true] %s229
          %235 = dma.hbm_to_vmem [thread:$0]  %s3, 12288, %s230, [#allocation6], 384, 384, 24
        $region16: #{global_attention_layer.1} parent=11 // pred_fallthru
          _
        // Predicated region
        $region17: #{global_attention_layer.1} parent=11 // pred_check
          %p236 = pneg %p140
        $region18: #{global_attention_layer.1} parent=11 // pred_check_branch
          %238 = sbr.rel (%p236) target = $region20
        $region19: #{global_attention_layer.1} parent=11 // pred_region
          _
        $region20: #{global_attention_layer.1} parent=11 // pred_fallthru
          _
        // Predicated region
        $region21: #{global_attention_layer.1} parent=11 // pred_check
          %p239 = pneg %p161
        $region22: #{global_attention_layer.1} parent=11 // pred_check_branch
          %241 = sbr.rel (%p239) target = $region24
        $region23: #{global_attention_layer.1} parent=11 // pred_region
          _
        $region24: #{global_attention_layer.1} parent=11 // pred_fallthru
          _
        // Predicated region
        $region25: #{global_attention_layer.1} parent=11 // pred_check
          %p242 = pneg %p182
        $region26: #{global_attention_layer.1} parent=11 // pred_check_branch
          %244 = sbr.rel (%p242) target = $region28
        $region27: #{global_attention_layer.1} parent=11 // pred_region
          _
        $region28: #{global_attention_layer.1} parent=11 // pred_fallthru
          _
      $region12: #{global_attention_layer.1} parent=5 // pred_fallthru
        _
      %p245 = scmp.lt.s32.totalorder %s20, 2
      // Predicated region
      $region29: #{global_attention_layer.1} parent=5 // pred_check
        %p246 = pneg %p245
      $region30: #{global_attention_layer.1} parent=5 // pred_check_branch
        %248 = sbr.rel (%p246) target = $region32
      $region31: #{global_attention_layer.1} parent=5 // pred_region
        // Predicated region
        $region33: #{global_attention_layer.1} parent=31 // pred_check
          %p249 = pneg %p40
        $region34: #{global_attention_layer.1} parent=31 // pred_check_branch
          %251 = sbr.rel (%p249) target = $region36
        $region35: #{global_attention_layer.1} parent=31 // pred_region
          %s252 = sand.u32 %s30, 1
          %s253 = scalar_lea.sflag [#allocation3], %s252
          %s254 = sand.u32 %s30, 1
          %s255 = smul.addr %s254, 16
          %s256 = scalar_lea.vmem [#allocation2], %s255
          %s258 = ssub.s32 256, 256
          %259 = vsyncadd %s253, %s258
          %s260 = smul.addr %s20, 2
          %s261 = smul.addr %s260, 128
          %s262 = scalar_lea.hbm %s0, %s261
          %s264 = sshll.u32 %s256, 4
          %s265 = int_to_ptr.vmem [resolvable:$true] %s264
          %267 = dma.hbm_to_vmem [thread:$0]  %s262, 256, %s265, %s253
        $region36: #{global_attention_layer.1} parent=31 // pred_fallthru
          _
        // Predicated region
        $region37: #{global_attention_layer.1} parent=31 // pred_check
          %p268 = pneg %p66
        $region38: #{global_attention_layer.1} parent=31 // pred_check_branch
          %270 = sbr.rel (%p268) target = $region40
        $region39: #{global_attention_layer.1} parent=31 // pred_region
          %p271 = scmp.lt.s32.totalorder %s20, 1
          %s272 = scalar_select %p271, %s20, 1
          %s273 = smul.addr %s272, 8
          %s274 = scalar_lea.vmem %s1, %s273
        $region40: #{global_attention_layer.1} parent=31 // pred_fallthru
          _
        // Predicated region
        $region41: #{global_attention_layer.1} parent=31 // pred_check
          %p275 = pneg %p92
        $region42: #{global_attention_layer.1} parent=31 // pred_check_branch
          %277 = sbr.rel (%p275) target = $region44
        $region43: #{global_attention_layer.1} parent=31 // pred_region
          %p278 = scmp.lt.s32.totalorder %s20, 1
          %s279 = scalar_select %p278, %s20, 1
          %s280 = scalar_lea.vmem %s2, %s279
        $region44: #{global_attention_layer.1} parent=31 // pred_fallthru
          _
      $region32: #{global_attention_layer.1} parent=5 // pred_fallthru
        _
      %p281 = scmp.le.s32.totalorder 1, %s20
      %p282 = scmp.lt.s32.totalorder %s20, 3
      %p283 = pnand %p281, %p282
      %p284 = pneg %p283
      // Predicated region
      $region45: #{global_attention_layer.1} parent=5 // pred_check
        _
      $region46: #{global_attention_layer.1} parent=5 // pred_check_branch
        %286 = sbr.rel (%p283) target = $region48
      $region47: #{global_attention_layer.1} parent=5 // pred_region
        %s287 = ssub.s32 %s20, 1
        %s288 = sand.u32 %s33, 1
        %s289 = scalar_lea.sflag [#allocation3], %s288
        %s290 = sand.u32 %s33, 1
        %s291 = smul.addr %s290, 16
        %s292 = scalar_lea.vmem [#allocation2], %s291
        // Predicated region
        $region49: #{global_attention_layer.1} parent=47 // pred_check
          %p293 = pneg %p46
        $region50: #{global_attention_layer.1} parent=47 // pred_check_branch
          %295 = sbr.rel (%p293) target = $region52
        $region51: #{global_attention_layer.1} parent=47 // pred_region
          %296 = dma.done %s289, 256
        $region52: #{global_attention_layer.1} parent=47 // pred_fallthru
          _
        // Predicated region
        $region53: #{global_attention_layer.1} parent=47 // pred_check
          %p297 = pneg %p119
        $region54: #{global_attention_layer.1} parent=47 // pred_check_branch
          %299 = sbr.rel (%p297) target = $region56
        $region55: #{global_attention_layer.1} parent=47 // pred_region
          %300 = dma.done [#allocation6], 12288
        $region56: #{global_attention_layer.1} parent=47 // pred_fallthru
          _
        %s301 = sand.u32 %s33, 1
        %s302 = scalar_lea.sflag [#allocation3], %s301
        %s303 = sand.u32 %s33, 1
        %s304 = smul.addr %s303, 16
        %s305 = scalar_lea.vmem [#allocation2], %s304
        %p306 = pneg %p46
        %p307 = pneg %p43
        %p308 = scmp.lt.s32.totalorder %s25, 1
        %s309 = scalar_select %p308, %s25, 1
        %s310 = smul.addr %s309, 8
        %s311 = scalar_lea.vmem %s1, %s310
        %p312 = pneg %p72
        %p313 = pneg %p69
        %p314 = scmp.lt.s32.totalorder %s25, 1
        %s315 = scalar_select %p314, %s25, 1
        %s316 = scalar_lea.vmem %s2, %s315
        %p317 = pneg %p98
        %p318 = pneg %p95
        %p319 = pneg %p119
        %p320 = pneg %p116
        %p321 = pneg %p140
        %p322 = pneg %p137
        %p323 = pneg %p161
        %p324 = pneg %p158
        %p325 = pneg %p182
        %p326 = pneg %p179
        %p327 = pneg %p208
        %p328 = pneg %p205
        %s329 = sand.u32 %s195, 1
        %s330 = scalar_lea.sflag [#allocation4], %s329
        %s331 = sand.u32 %s195, 1
        %s332 = smul.addr %s331, 16
        %s333 = scalar_lea.vmem [#allocation7], %s332
        %p334 = scmp.lt.s32.totalorder %s25, 1
        %s335 = scalar_select %p334, %s25, 1
        %s336 = smul.addr %s335, 8
        %s337 = scalar_lea.vmem %s1, %s336
        %p338 = scmp.lt.s32.totalorder %s25, 1
        %s339 = scalar_select %p338, %s25, 1
        %s340 = scalar_lea.vmem %s2, %s339
        %v342 = vld [vmem:[%s292] sm:$0xff]
        %v343 = vld [vmem:[%s292 + $0x8] sm:$0xff]
        %v344 = vpack.c.bf16 %v342, %v342
        %v345 = vpack.c.bf16 %v343, %v343
        %v346 = vld [vmem:[#allocation5] sm:$0xff]
        %v347 = vld [vmem:[#allocation5 + $0x8] sm:$0xff]
        %v348 = vld [vmem:[#allocation5 + $0x10] sm:$0xff]
        %v349 = vld [vmem:[#allocation5 + $0x18] sm:$0xff]
        %v350 = vld [vmem:[#allocation5 + $0x20] sm:$0xff]
        %v351 = vld [vmem:[#allocation5 + $0x28] sm:$0xff]
        %v352 = vld [vmem:[#allocation5 + $0x30] sm:$0xff]
        %v353 = vld [vmem:[#allocation5 + $0x38] sm:$0xff]
        %v354 = vld [vmem:[#allocation5 + $0x40] sm:$0xff]
        %v355 = vld [vmem:[#allocation5 + $0x48] sm:$0xff]
        %v356 = vld [vmem:[#allocation5 + $0x50] sm:$0xff]
        %v357 = vld [vmem:[#allocation5 + $0x58] sm:$0xff]
        %v358 = vld [vmem:[#allocation5 + $0x60] sm:$0xff]
        %v359 = vld [vmem:[#allocation5 + $0x68] sm:$0xff]
        %v360 = vld [vmem:[#allocation5 + $0x70] sm:$0xff]
        %v361 = vld [vmem:[#allocation5 + $0x78] sm:$0xff]
        %v362 = vld [vmem:[#allocation5 + $0x80] sm:$0xff]
        %v363 = vld [vmem:[#allocation5 + $0x88] sm:$0xff]
        %v364 = vld [vmem:[#allocation5 + $0x90] sm:$0xff]
        %v365 = vld [vmem:[#allocation5 + $0x98] sm:$0xff]
        %v366 = vld [vmem:[#allocation5 + $0xa0] sm:$0xff]
        %v367 = vld [vmem:[#allocation5 + $0xa8] sm:$0xff]
        %v368 = vld [vmem:[#allocation5 + $0xb0] sm:$0xff]
        %v369 = vld [vmem:[#allocation5 + $0xb8] sm:$0xff]
        %v370 = vld [vmem:[#allocation5 + $0xc0] sm:$0xff]
        %v371 = vld [vmem:[#allocation5 + $0xc8] sm:$0xff]
        %v372 = vld [vmem:[#allocation5 + $0xd0] sm:$0xff]
        %v373 = vld [vmem:[#allocation5 + $0xd8] sm:$0xff]
        %v374 = vld [vmem:[#allocation5 + $0xe0] sm:$0xff]
        %v375 = vld [vmem:[#allocation5 + $0xe8] sm:$0xff]
        %v376 = vld [vmem:[#allocation5 + $0xf0] sm:$0xff]
        %v377 = vld [vmem:[#allocation5 + $0xf8] sm:$0xff]
        %v378 = vld [vmem:[#allocation5 + $0x100] sm:$0xff]
        %v379 = vld [vmem:[#allocation5 + $0x108] sm:$0xff]
        %v380 = vld [vmem:[#allocation5 + $0x110] sm:$0xff]
        %v381 = vld [vmem:[#allocation5 + $0x118] sm:$0xff]
        %v382 = vld [vmem:[#allocation5 + $0x120] sm:$0xff]
        %v383 = vld [vmem:[#allocation5 + $0x128] sm:$0xff]
        %v384 = vld [vmem:[#allocation5 + $0x130] sm:$0xff]
        %v385 = vld [vmem:[#allocation5 + $0x138] sm:$0xff]
        %v386 = vld [vmem:[#allocation5 + $0x140] sm:$0xff]
        %v387 = vld [vmem:[#allocation5 + $0x148] sm:$0xff]
        %v388 = vld [vmem:[#allocation5 + $0x150] sm:$0xff]
        %v389 = vld [vmem:[#allocation5 + $0x158] sm:$0xff]
        %v390 = vld [vmem:[#allocation5 + $0x160] sm:$0xff]
        %v391 = vld [vmem:[#allocation5 + $0x168] sm:$0xff]
        %v392 = vld [vmem:[#allocation5 + $0x170] sm:$0xff]
        %v393 = vld [vmem:[#allocation5 + $0x178] sm:$0xff]
        %v394 = vld [vmem:[#allocation5 + $0x180] sm:$0xff]
        %v395 = vld [vmem:[#allocation5 + $0x188] sm:$0xff]
        %v396 = vld [vmem:[#allocation5 + $0x190] sm:$0xff]
        %v397 = vld [vmem:[#allocation5 + $0x198] sm:$0xff]
        %v398 = vld [vmem:[#allocation5 + $0x1a0] sm:$0xff]
        %v399 = vld [vmem:[#allocation5 + $0x1a8] sm:$0xff]
        %v400 = vld [vmem:[#allocation5 + $0x1b0] sm:$0xff]
        %v401 = vld [vmem:[#allocation5 + $0x1b8] sm:$0xff]
        %v402 = vld [vmem:[#allocation5 + $0x1c0] sm:$0xff]
        %v403 = vld [vmem:[#allocation5 + $0x1c8] sm:$0xff]
        %v404 = vld [vmem:[#allocation5 + $0x1d0] sm:$0xff]
        %v405 = vld [vmem:[#allocation5 + $0x1d8] sm:$0xff]
        %v406 = vld [vmem:[#allocation5 + $0x1e0] sm:$0xff]
        %v407 = vld [vmem:[#allocation5 + $0x1e8] sm:$0xff]
        %v408 = vld [vmem:[#allocation5 + $0x1f0] sm:$0xff]
        %v409 = vld [vmem:[#allocation5 + $0x1f8] sm:$0xff]
        %v410 = vld [vmem:[#allocation5 + $0x200] sm:$0xff]
        %v411 = vld [vmem:[#allocation5 + $0x208] sm:$0xff]
        %v412 = vld [vmem:[#allocation5 + $0x210] sm:$0xff]
        %v413 = vld [vmem:[#allocation5 + $0x218] sm:$0xff]
        %v414 = vld [vmem:[#allocation5 + $0x220] sm:$0xff]
        %v415 = vld [vmem:[#allocation5 + $0x228] sm:$0xff]
        %v416 = vld [vmem:[#allocation5 + $0x230] sm:$0xff]
        %v417 = vld [vmem:[#allocation5 + $0x238] sm:$0xff]
        %v418 = vld [vmem:[#allocation5 + $0x240] sm:$0xff]
        %v419 = vld [vmem:[#allocation5 + $0x248] sm:$0xff]
        %v420 = vld [vmem:[#allocation5 + $0x250] sm:$0xff]
        %v421 = vld [vmem:[#allocation5 + $0x258] sm:$0xff]
        %v422 = vld [vmem:[#allocation5 + $0x260] sm:$0xff]
        %v423 = vld [vmem:[#allocation5 + $0x268] sm:$0xff]
        %v424 = vld [vmem:[#allocation5 + $0x270] sm:$0xff]
        %v425 = vld [vmem:[#allocation5 + $0x278] sm:$0xff]
        %v426 = vld [vmem:[#allocation5 + $0x280] sm:$0xff]
        %v427 = vld [vmem:[#allocation5 + $0x288] sm:$0xff]
        %v428 = vld [vmem:[#allocation5 + $0x290] sm:$0xff]
        %v429 = vld [vmem:[#allocation5 + $0x298] sm:$0xff]
        %v430 = vld [vmem:[#allocation5 + $0x2a0] sm:$0xff]
        %v431 = vld [vmem:[#allocation5 + $0x2a8] sm:$0xff]
        %v432 = vld [vmem:[#allocation5 + $0x2b0] sm:$0xff]
        %v433 = vld [vmem:[#allocation5 + $0x2b8] sm:$0xff]
        %v434 = vld [vmem:[#allocation5 + $0x2c0] sm:$0xff]
        %v435 = vld [vmem:[#allocation5 + $0x2c8] sm:$0xff]
        %v436 = vld [vmem:[#allocation5 + $0x2d0] sm:$0xff]
        %v437 = vld [vmem:[#allocation5 + $0x2d8] sm:$0xff]
        %v438 = vld [vmem:[#allocation5 + $0x2e0] sm:$0xff]
        %v439 = vld [vmem:[#allocation5 + $0x2e8] sm:$0xff]
        %v440 = vld [vmem:[#allocation5 + $0x2f0] sm:$0xff]
        %v441 = vld [vmem:[#allocation5 + $0x2f8] sm:$0xff]
        %v442 = vld [vmem:[%s4] sm:$0x3f]
        %v444 = vlaneseq
        %v445 = vshrl.u32 %v444, 7
        %v446 = vsub.s32 0, %v445
        %v447 = vrot.slane %v442, %v446
        %v448 = vlaneseq
        %v449 = vshrl.u32 %v448, 7
        %v450 = vsub.s32 1, %v449
        %v451 = vrot.slane %v442, %v450
        %v452 = vlaneseq
        %v453 = vshrl.u32 %v452, 7
        %v454 = vsub.s32 2, %v453
        %v455 = vrot.slane %v442, %v454
        %v456 = vlaneseq
        %v457 = vshrl.u32 %v456, 7
        %v458 = vsub.s32 3, %v457
        %v459 = vrot.slane %v442, %v458
        %v460 = vlaneseq
        %v461 = vshrl.u32 %v460, 7
        %v462 = vsub.s32 4, %v461
        %v463 = vrot.slane %v442, %v462
        %v464 = vlaneseq
        %v465 = vshrl.u32 %v464, 7
        %v466 = vsub.s32 5, %v465
        %v467 = vrot.slane %v442, %v466
        %v570 = vunpack.c.l.b16 %v346
        %v571 = vunpack.c.h.b16 %v346
        %v572 = vunpack.c.l.b16 %v347
        %v573 = vunpack.c.h.b16 %v347
        %v574 = vunpack.c.l.b16 %v348
        %v575 = vunpack.c.h.b16 %v348
        %v576 = vunpack.c.l.b16 %v349
        %v577 = vunpack.c.h.b16 %v349
        %v578 = vunpack.c.l.b16 %v350
        %v579 = vunpack.c.h.b16 %v350
        %v580 = vunpack.c.l.b16 %v351
        %v581 = vunpack.c.h.b16 %v351
        %v582 = vunpack.c.l.b16 %v352
        %v583 = vunpack.c.h.b16 %v352
        %v584 = vunpack.c.l.b16 %v353
        %v585 = vunpack.c.h.b16 %v353
        %v586 = vunpack.c.l.b16 %v354
        %v587 = vunpack.c.h.b16 %v354
        %v588 = vunpack.c.l.b16 %v355
        %v589 = vunpack.c.h.b16 %v355
        %v590 = vunpack.c.l.b16 %v356
        %v591 = vunpack.c.h.b16 %v356
        %v592 = vunpack.c.l.b16 %v357
        %v593 = vunpack.c.h.b16 %v357
        %v594 = vunpack.c.l.b16 %v358
        %v595 = vunpack.c.h.b16 %v358
        %v596 = vunpack.c.l.b16 %v359
        %v597 = vunpack.c.h.b16 %v359
        %v598 = vunpack.c.l.b16 %v360
        %v599 = vunpack.c.h.b16 %v360
        %v600 = vunpack.c.l.b16 %v361
        %v601 = vunpack.c.h.b16 %v361
        %v602 = vunpack.c.l.b16 %v362
        %v603 = vunpack.c.h.b16 %v362
        %v604 = vunpack.c.l.b16 %v363
        %v605 = vunpack.c.h.b16 %v363
        %v606 = vunpack.c.l.b16 %v364
        %v607 = vunpack.c.h.b16 %v364
        %v608 = vunpack.c.l.b16 %v365
        %v609 = vunpack.c.h.b16 %v365
        %v610 = vunpack.c.l.b16 %v366
        %v611 = vunpack.c.h.b16 %v366
        %v612 = vunpack.c.l.b16 %v367
        %v613 = vunpack.c.h.b16 %v367
        %v614 = vunpack.c.l.b16 %v368
        %v615 = vunpack.c.h.b16 %v368
        %v616 = vunpack.c.l.b16 %v369
        %v617 = vunpack.c.h.b16 %v369
        %v618 = vunpack.c.l.b16 %v370
        %v619 = vunpack.c.h.b16 %v370
        %v620 = vunpack.c.l.b16 %v371
        %v621 = vunpack.c.h.b16 %v371
        %v622 = vunpack.c.l.b16 %v372
        %v623 = vunpack.c.h.b16 %v372
        %v624 = vunpack.c.l.b16 %v373
        %v625 = vunpack.c.h.b16 %v373
        %v626 = vunpack.c.l.b16 %v374
        %v627 = vunpack.c.h.b16 %v374
        %v628 = vunpack.c.l.b16 %v375
        %v629 = vunpack.c.h.b16 %v375
        %v630 = vunpack.c.l.b16 %v376
        %v631 = vunpack.c.h.b16 %v376
        %v632 = vunpack.c.l.b16 %v377
        %v633 = vunpack.c.h.b16 %v377
        %v634 = vunpack.c.l.b16 %v378
        %v635 = vunpack.c.h.b16 %v378
        %v636 = vunpack.c.l.b16 %v379
        %v637 = vunpack.c.h.b16 %v379
        %v638 = vunpack.c.l.b16 %v380
        %v639 = vunpack.c.h.b16 %v380
        %v640 = vunpack.c.l.b16 %v381
        %v641 = vunpack.c.h.b16 %v381
        %v642 = vunpack.c.l.b16 %v382
        %v643 = vunpack.c.h.b16 %v382
        %v644 = vunpack.c.l.b16 %v383
        %v645 = vunpack.c.h.b16 %v383
        %v646 = vunpack.c.l.b16 %v384
        %v647 = vunpack.c.h.b16 %v384
        %v648 = vunpack.c.l.b16 %v385
        %v649 = vunpack.c.h.b16 %v385
        %v650 = vunpack.c.l.b16 %v386
        %v651 = vunpack.c.h.b16 %v386
        %v652 = vunpack.c.l.b16 %v387
        %v653 = vunpack.c.h.b16 %v387
        %v654 = vunpack.c.l.b16 %v388
        %v655 = vunpack.c.h.b16 %v388
        %v656 = vunpack.c.l.b16 %v389
        %v657 = vunpack.c.h.b16 %v389
        %v658 = vunpack.c.l.b16 %v390
        %v659 = vunpack.c.h.b16 %v390
        %v660 = vunpack.c.l.b16 %v391
        %v661 = vunpack.c.h.b16 %v391
        %v662 = vunpack.c.l.b16 %v392
        %v663 = vunpack.c.h.b16 %v392
        %v664 = vunpack.c.l.b16 %v393
        %v665 = vunpack.c.h.b16 %v393
        %v666 = vunpack.c.l.b16 %v394
        %v667 = vunpack.c.h.b16 %v394
        %v668 = vunpack.c.l.b16 %v395
        %v669 = vunpack.c.h.b16 %v395
        %v670 = vunpack.c.l.b16 %v396
        %v671 = vunpack.c.h.b16 %v396
        %v672 = vunpack.c.l.b16 %v397
        %v673 = vunpack.c.h.b16 %v397
        %v674 = vunpack.c.l.b16 %v398
        %v675 = vunpack.c.h.b16 %v398
        %v676 = vunpack.c.l.b16 %v399
        %v677 = vunpack.c.h.b16 %v399
        %v678 = vunpack.c.l.b16 %v400
        %v679 = vunpack.c.h.b16 %v400
        %v680 = vunpack.c.l.b16 %v401
        %v681 = vunpack.c.h.b16 %v401
        %v682 = vunpack.c.l.b16 %v402
        %v683 = vunpack.c.h.b16 %v402
        %v684 = vunpack.c.l.b16 %v403
        %v685 = vunpack.c.h.b16 %v403
        %v686 = vunpack.c.l.b16 %v404
        %v687 = vunpack.c.h.b16 %v404
        %v688 = vunpack.c.l.b16 %v405
        %v689 = vunpack.c.h.b16 %v405
        %v690 = vunpack.c.l.b16 %v406
        %v691 = vunpack.c.h.b16 %v406
        %v692 = vunpack.c.l.b16 %v407
        %v693 = vunpack.c.h.b16 %v407
        %v694 = vunpack.c.l.b16 %v408
        %v695 = vunpack.c.h.b16 %v408
        %v696 = vunpack.c.l.b16 %v409
        %v697 = vunpack.c.h.b16 %v409
        %v698 = vunpack.c.l.b16 %v410
        %v699 = vunpack.c.h.b16 %v410
        %v700 = vunpack.c.l.b16 %v411
        %v701 = vunpack.c.h.b16 %v411
        %v702 = vunpack.c.l.b16 %v412
        %v703 = vunpack.c.h.b16 %v412
        %v704 = vunpack.c.l.b16 %v413
        %v705 = vunpack.c.h.b16 %v413
        %v706 = vunpack.c.l.b16 %v414
        %v707 = vunpack.c.h.b16 %v414
        %v708 = vunpack.c.l.b16 %v415
        %v709 = vunpack.c.h.b16 %v415
        %v710 = vunpack.c.l.b16 %v416
        %v711 = vunpack.c.h.b16 %v416
        %v712 = vunpack.c.l.b16 %v417
        %v713 = vunpack.c.h.b16 %v417
        %v714 = vunpack.c.l.b16 %v418
        %v715 = vunpack.c.h.b16 %v418
        %v716 = vunpack.c.l.b16 %v419
        %v717 = vunpack.c.h.b16 %v419
        %v718 = vunpack.c.l.b16 %v420
        %v719 = vunpack.c.h.b16 %v420
        %v720 = vunpack.c.l.b16 %v421
        %v721 = vunpack.c.h.b16 %v421
        %v722 = vunpack.c.l.b16 %v422
        %v723 = vunpack.c.h.b16 %v422
        %v724 = vunpack.c.l.b16 %v423
        %v725 = vunpack.c.h.b16 %v423
        %v726 = vunpack.c.l.b16 %v424
        %v727 = vunpack.c.h.b16 %v424
        %v728 = vunpack.c.l.b16 %v425
        %v729 = vunpack.c.h.b16 %v425
        %v730 = vunpack.c.l.b16 %v426
        %v731 = vunpack.c.h.b16 %v426
        %v732 = vunpack.c.l.b16 %v427
        %v733 = vunpack.c.h.b16 %v427
        %v734 = vunpack.c.l.b16 %v428
        %v735 = vunpack.c.h.b16 %v428
        %v736 = vunpack.c.l.b16 %v429
        %v737 = vunpack.c.h.b16 %v429
        %v738 = vunpack.c.l.b16 %v430
        %v739 = vunpack.c.h.b16 %v430
        %v740 = vunpack.c.l.b16 %v431
        %v741 = vunpack.c.h.b16 %v431
        %v742 = vunpack.c.l.b16 %v432
        %v743 = vunpack.c.h.b16 %v432
        %v744 = vunpack.c.l.b16 %v433
        %v745 = vunpack.c.h.b16 %v433
        %v746 = vunpack.c.l.b16 %v434
        %v747 = vunpack.c.h.b16 %v434
        %v748 = vunpack.c.l.b16 %v435
        %v749 = vunpack.c.h.b16 %v435
        %v750 = vunpack.c.l.b16 %v436
        %v751 = vunpack.c.h.b16 %v436
        %v752 = vunpack.c.l.b16 %v437
        %v753 = vunpack.c.h.b16 %v437
        %v754 = vunpack.c.l.b16 %v438
        %v755 = vunpack.c.h.b16 %v438
        %v756 = vunpack.c.l.b16 %v439
        %v757 = vunpack.c.h.b16 %v439
        %v758 = vunpack.c.l.b16 %v440
        %v759 = vunpack.c.h.b16 %v440
        %v760 = vunpack.c.l.b16 %v441
        %v761 = vunpack.c.h.b16 %v441
        %v762 = vpack.c.b16 %v576, %v570
        %v763 = vpack.c.b16 %v577, %v571
        %v764 = vpack.c.b16 %v578, %v572
        %v765 = vpack.c.b16 %v579, %v573
        %v766 = vpack.c.b16 %v580, %v574
        %v767 = vpack.c.b16 %v581, %v575
        %v768 = vpack.c.b16 %v588, %v582
        %v769 = vpack.c.b16 %v589, %v583
        %v770 = vpack.c.b16 %v590, %v584
        %v771 = vpack.c.b16 %v591, %v585
        %v772 = vpack.c.b16 %v592, %v586
        %v773 = vpack.c.b16 %v593, %v587
        %v774 = vpack.c.b16 %v600, %v594
        %v775 = vpack.c.b16 %v601, %v595
        %v776 = vpack.c.b16 %v602, %v596
        %v777 = vpack.c.b16 %v603, %v597
        %v778 = vpack.c.b16 %v604, %v598
        %v779 = vpack.c.b16 %v605, %v599
        %v780 = vpack.c.b16 %v612, %v606
        %v781 = vpack.c.b16 %v613, %v607
        %v782 = vpack.c.b16 %v614, %v608
        %v783 = vpack.c.b16 %v615, %v609
        %v784 = vpack.c.b16 %v616, %v610
        %v785 = vpack.c.b16 %v617, %v611
        %v786 = vpack.c.b16 %v624, %v618
        %v787 = vpack.c.b16 %v625, %v619
        %v788 = vpack.c.b16 %v626, %v620
        %v789 = vpack.c.b16 %v627, %v621
        %v790 = vpack.c.b16 %v628, %v622
        %v791 = vpack.c.b16 %v629, %v623
        %v792 = vpack.c.b16 %v636, %v630
        %v793 = vpack.c.b16 %v637, %v631
        %v794 = vpack.c.b16 %v638, %v632
        %v795 = vpack.c.b16 %v639, %v633
        %v796 = vpack.c.b16 %v640, %v634
        %v797 = vpack.c.b16 %v641, %v635
        %v798 = vpack.c.b16 %v648, %v642
        %v799 = vpack.c.b16 %v649, %v643
        %v800 = vpack.c.b16 %v650, %v644
        %v801 = vpack.c.b16 %v651, %v645
        %v802 = vpack.c.b16 %v652, %v646
        %v803 = vpack.c.b16 %v653, %v647
        %v804 = vpack.c.b16 %v660, %v654
        %v805 = vpack.c.b16 %v661, %v655
        %v806 = vpack.c.b16 %v662, %v656
        %v807 = vpack.c.b16 %v663, %v657
        %v808 = vpack.c.b16 %v664, %v658
        %v809 = vpack.c.b16 %v665, %v659
        %v810 = vpack.c.b16 %v672, %v666
        %v811 = vpack.c.b16 %v673, %v667
        %v812 = vpack.c.b16 %v674, %v668
        %v813 = vpack.c.b16 %v675, %v669
        %v814 = vpack.c.b16 %v676, %v670
        %v815 = vpack.c.b16 %v677, %v671
        %v816 = vpack.c.b16 %v684, %v678
        %v817 = vpack.c.b16 %v685, %v679
        %v818 = vpack.c.b16 %v686, %v680
        %v819 = vpack.c.b16 %v687, %v681
        %v820 = vpack.c.b16 %v688, %v682
        %v821 = vpack.c.b16 %v689, %v683
        %v822 = vpack.c.b16 %v696, %v690
        %v823 = vpack.c.b16 %v697, %v691
        %v824 = vpack.c.b16 %v698, %v692
        %v825 = vpack.c.b16 %v699, %v693
        %v826 = vpack.c.b16 %v700, %v694
        %v827 = vpack.c.b16 %v701, %v695
        %v828 = vpack.c.b16 %v708, %v702
        %v829 = vpack.c.b16 %v709, %v703
        %v830 = vpack.c.b16 %v710, %v704
        %v831 = vpack.c.b16 %v711, %v705
        %v832 = vpack.c.b16 %v712, %v706
        %v833 = vpack.c.b16 %v713, %v707
        %v834 = vpack.c.b16 %v720, %v714
        %v835 = vpack.c.b16 %v721, %v715
        %v836 = vpack.c.b16 %v722, %v716
        %v837 = vpack.c.b16 %v723, %v717
        %v838 = vpack.c.b16 %v724, %v718
        %v839 = vpack.c.b16 %v725, %v719
        %v840 = vpack.c.b16 %v732, %v726
        %v841 = vpack.c.b16 %v733, %v727
        %v842 = vpack.c.b16 %v734, %v728
        %v843 = vpack.c.b16 %v735, %v729
        %v844 = vpack.c.b16 %v736, %v730
        %v845 = vpack.c.b16 %v737, %v731
        %v846 = vpack.c.b16 %v744, %v738
        %v847 = vpack.c.b16 %v745, %v739
        %v848 = vpack.c.b16 %v746, %v740
        %v849 = vpack.c.b16 %v747, %v741
        %v850 = vpack.c.b16 %v748, %v742
        %v851 = vpack.c.b16 %v749, %v743
        %v852 = vpack.c.b16 %v756, %v750
        %v853 = vpack.c.b16 %v757, %v751
        %v854 = vpack.c.b16 %v758, %v752
        %v855 = vpack.c.b16 %v759, %v753
        %v856 = vpack.c.b16 %v760, %v754
        %v857 = vpack.c.b16 %v761, %v755
        %954 = vmatprep.subr.bf16.mxu0 %v763
        %955 = vmatpush1.bf16.msra.mxu0 %v762
        %956 = vmatprep.subr.bf16.mxu0 %v769
        %957 = vmatpush1.bf16.msra.mxu0 %v768
        %958 = vmatprep.subr.bf16.mxu0 %v775
        %959 = vmatpush1.bf16.msra.mxu0 %v774
        %960 = vmatprep.subr.bf16.mxu0 %v781
        %961 = vmatpush1.bf16.msra.mxu0 %v780
        %962 = vmatprep.subr.bf16.mxu0 %v787
        %963 = vmatpush1.bf16.msra.mxu0 %v786
        %964 = vmatprep.subr.bf16.mxu0 %v793
        %965 = vmatpush1.bf16.msra.mxu0 %v792
        %966 = vmatprep.subr.bf16.mxu0 %v799
        %967 = vmatpush1.bf16.msra.mxu0 %v798
        %968 = vmatprep.subr.bf16.mxu0 %v805
        %969 = vmatpush1.bf16.msra.mxu0 %v804
        %970 = vmatprep.subr.bf16.mxu0 %v811
        %971 = vmatpush1.bf16.msra.mxu0 %v810
        %972 = vmatprep.subr.bf16.mxu0 %v817
        %973 = vmatpush1.bf16.msra.mxu0 %v816
        %974 = vmatprep.subr.bf16.mxu0 %v823
        %975 = vmatpush1.bf16.msra.mxu0 %v822
        %976 = vmatprep.subr.bf16.mxu0 %v829
        %977 = vmatpush1.bf16.msra.mxu0 %v828
        %978 = vmatprep.subr.bf16.mxu0 %v835
        %979 = vmatpush1.bf16.msra.mxu0 %v834
        %980 = vmatprep.subr.bf16.mxu0 %v841
        %981 = vmatpush1.bf16.msra.mxu0 %v840
        %982 = vmatprep.subr.bf16.mxu0 %v847
        %983 = vmatpush1.bf16.msra.mxu0 %v846
        %984 = vmatprep.subr.bf16.mxu0 %v853
        %985 = vmatpush1.bf16.msra.mxu0 %v852
        %986 = vmatprep.mubr.bf16.mxu0 %v345
        %987 = vmatmul.mubr.bf16.gmra.mrb[0].mxu0 %v344
        %v988 = vpop.f32.mrb[0].mxu0
        %v989 = vadd.f32 %v447, %v988
        %v990 = vpop.f32.mrb[0].mxu0
        %v991 = vadd.f32 %v451, %v990
        %v992 = vpop.f32.mrb[0].mxu0
        %v993 = vpop.f32.mrb[0].mxu0
        %994 = vdwg.mxu0
        %995 = vmatprep.subr.bf16.mxu0 %v765
        %996 = vmatpush1.bf16.msra.mxu0 %v764
        %997 = vmatprep.subr.bf16.mxu0 %v771
        %998 = vmatpush1.bf16.msra.mxu0 %v770
        %999 = vmatprep.subr.bf16.mxu0 %v777
        %1000 = vmatpush1.bf16.msra.mxu0 %v776
        %1001 = vmatprep.subr.bf16.mxu0 %v783
        %1002 = vmatpush1.bf16.msra.mxu0 %v782
        %1003 = vmatprep.subr.bf16.mxu0 %v789
        %1004 = vmatpush1.bf16.msra.mxu0 %v788
        %1005 = vmatprep.subr.bf16.mxu0 %v795
        %1006 = vmatpush1.bf16.msra.mxu0 %v794
        %1007 = vmatprep.subr.bf16.mxu0 %v801
        %1008 = vmatpush1.bf16.msra.mxu0 %v800
        %1009 = vmatprep.subr.bf16.mxu0 %v807
        %1010 = vmatpush1.bf16.msra.mxu0 %v806
        %1011 = vmatprep.subr.bf16.mxu0 %v813
        %1012 = vmatpush1.bf16.msra.mxu0 %v812
        %1013 = vmatprep.subr.bf16.mxu0 %v819
        %1014 = vmatpush1.bf16.msra.mxu0 %v818
        %1015 = vmatprep.subr.bf16.mxu0 %v825
        %1016 = vmatpush1.bf16.msra.mxu0 %v824
        %1017 = vmatprep.subr.bf16.mxu0 %v831
        %1018 = vmatpush1.bf16.msra.mxu0 %v830
        %1019 = vmatprep.subr.bf16.mxu0 %v837
        %1020 = vmatpush1.bf16.msra.mxu0 %v836
        %1021 = vmatprep.subr.bf16.mxu0 %v843
        %1022 = vmatpush1.bf16.msra.mxu0 %v842
        %1023 = vmatprep.subr.bf16.mxu0 %v849
        %1024 = vmatpush1.bf16.msra.mxu0 %v848
        %1025 = vmatprep.subr.bf16.mxu0 %v855
        %1026 = vmatpush1.bf16.msra.mxu0 %v854
        %1027 = vmatprep.mubr.bf16.mxu0 %v345
        %1028 = vmatmul.mubr.bf16.gmra.mrb[0].mxu0 %v344
        %v1029 = vpop.f32.mrb[0].mxu0
        %v1030 = vadd.f32 %v455, %v1029
        %v1031 = vpop.f32.mrb[0].mxu0
        %v1032 = vadd.f32 %v459, %v1031
        %v1033 = vpop.f32.mrb[0].mxu0
        %v1034 = vpop.f32.mrb[0].mxu0
        %1035 = vdwg.mxu0
        %1036 = vmatprep.subr.bf16.mxu0 %v767
        %1037 = vmatpush1.bf16.msra.mxu0 %v766
        %1038 = vmatprep.subr.bf16.mxu0 %v773
        %1039 = vmatpush1.bf16.msra.mxu0 %v772
        %1040 = vmatprep.subr.bf16.mxu0 %v779
        %1041 = vmatpush1.bf16.msra.mxu0 %v778
        %1042 = vmatprep.subr.bf16.mxu0 %v785
        %1043 = vmatpush1.bf16.msra.mxu0 %v784
        %1044 = vmatprep.subr.bf16.mxu0 %v791
        %1045 = vmatpush1.bf16.msra.mxu0 %v790
        %1046 = vmatprep.subr.bf16.mxu0 %v797
        %1047 = vmatpush1.bf16.msra.mxu0 %v796
        %1048 = vmatprep.subr.bf16.mxu0 %v803
        %1049 = vmatpush1.bf16.msra.mxu0 %v802
        %1050 = vmatprep.subr.bf16.mxu0 %v809
        %1051 = vmatpush1.bf16.msra.mxu0 %v808
        %1052 = vmatprep.subr.bf16.mxu0 %v815
        %1053 = vmatpush1.bf16.msra.mxu0 %v814
        %1054 = vmatprep.subr.bf16.mxu0 %v821
        %1055 = vmatpush1.bf16.msra.mxu0 %v820
        %1056 = vmatprep.subr.bf16.mxu0 %v827
        %1057 = vmatpush1.bf16.msra.mxu0 %v826
        %1058 = vmatprep.subr.bf16.mxu0 %v833
        %1059 = vmatpush1.bf16.msra.mxu0 %v832
        %1060 = vmatprep.subr.bf16.mxu0 %v839
        %1061 = vmatpush1.bf16.msra.mxu0 %v838
        %1062 = vmatprep.subr.bf16.mxu0 %v845
        %1063 = vmatpush1.bf16.msra.mxu0 %v844
        %1064 = vmatprep.subr.bf16.mxu0 %v851
        %1065 = vmatpush1.bf16.msra.mxu0 %v850
        %1066 = vmatprep.subr.bf16.mxu0 %v857
        %1067 = vmatpush1.bf16.msra.mxu0 %v856
        %1068 = vmatprep.mubr.bf16.mxu0 %v345
        %1069 = vmatmul.mubr.bf16.gmra.mrb[0].mxu0 %v344
        %v1070 = vpop.f32.mrb[0].mxu0
        %v1071 = vadd.f32 %v463, %v1070
        %v1072 = vpop.f32.mrb[0].mxu0
        %v1073 = vadd.f32 %v467, %v1072
        %v1074 = vpop.f32.mrb[0].mxu0
        %v1075 = vpop.f32.mrb[0].mxu0
        %1076 = vdwg.mxu0
        %v1077 = vpack.c.bf16 %v989, %v989
        %v1078 = vpack.c.bf16 %v991, %v991
        %v1079 = vpack.c.bf16 %v1030, %v1030
        %v1080 = vpack.c.bf16 %v1032, %v1032
        %v1081 = vld [vmem:[%s337] sm:$0xff]
        %v1082 = vld [vmem:[%s340] sm:$0x1]
        %1084 = vset.pattern.permute.xlu0 0
        %1085 = vperm.xlu0 %1084, %v1081
        %v1086 = vpop.permute.xlu0 %1085
        %v1089 = vlaneseq
        %v1090 = vshrl.u32 %v1089, 7
        %v1091 = vsub.s32 0, %v1090
        %v1092 = vrot.slane %v1082, %v1091
        %v1094 = vmul.f32 %v1086, %v1092
        %v1095 = vsub.f32 1.0, %v1094
        %v1096 = vmul.f32 %v1095, 100000.0
        %v1097 = vsub.f32 %v1094, %v1096
        %1098 = vmatprep.subr.bf16.mxu0 %v1080
        %1099 = vmatpush1.bf16.xpose.msra.mxu0 %v1079
        %1100 = vmatprep.subr.bf16.mxu0 0
        %1101 = vmatpush1.bf16.xpose.msra.mxu0 0
        %1102 = vmatprep.subr.bf16.mxu0 0
        %1103 = vmatpush1.bf16.xpose.msra.mxu0 0
        %1104 = vmatprep.subr.bf16.mxu0 0
        %1105 = vmatpush1.bf16.xpose.msra.mxu0 0
        %1106 = vmatprep.subr.bf16.mxu0 0
        %1107 = vmatpush1.bf16.xpose.msra.mxu0 0
        %1108 = vmatprep.subr.bf16.mxu0 0
        %1109 = vmatpush1.bf16.xpose.msra.mxu0 0
        %1110 = vmatprep.subr.bf16.mxu0 0
        %1111 = vmatpush1.bf16.xpose.msra.mxu0 0
        %1112 = vmatprep.subr.bf16.mxu0 0
        %1113 = vmatpush1.bf16.xpose.msra.mxu0 0
        %1114 = vmatprep.subr.bf16.mxu0 0
        %1115 = vmatpush1.bf16.xpose.msra.mxu0 0
        %1116 = vmatprep.subr.bf16.mxu0 0
        %1117 = vmatpush1.bf16.xpose.msra.mxu0 0
        %1118 = vmatprep.subr.bf16.mxu0 0
        %1119 = vmatpush1.bf16.xpose.msra.mxu0 0
        %1120 = vmatprep.subr.bf16.mxu0 0
        %1121 = vmatpush1.bf16.xpose.msra.mxu0 0
        %1122 = vmatprep.subr.bf16.mxu0 0
        %1123 = vmatpush1.bf16.xpose.msra.mxu0 0
        %1124 = vmatprep.subr.bf16.mxu0 0
        %1125 = vmatpush1.bf16.xpose.msra.mxu0 0
        %1126 = vmatprep.subr.bf16.mxu0 0
        %1127 = vmatpush1.bf16.xpose.msra.mxu0 0
        %1128 = vmatprep.subr.bf16.mxu0 0
        %1129 = vmatpush1.bf16.xpose.msra.mxu0 0
        %1130 = vmatprep.mubr.bf16.mxu0 %v1078
        %1131 = vmatmul.mubr.bf16.gmra.mrb[0].mxu0 %v1077
        %v1132 = vpop.f32.mrb[0].mxu0
        %v1133 = vadd.f32 %v1097, %v1132
        %v1134 = vpop.f32.mrb[0].mxu0
        %v1135 = vpop.f32.mrb[0].mxu0
        %v1136 = vpop.f32.mrb[0].mxu0
        %1137 = vdwg.mxu0
        %vm1138 = vcmask 64512
        %v1139 = vsel %vm1138, %v1133, -inf
        %1140 = vmax.xlane.f32.xlu0 %v1139
        %v1141 = vpop.xlane.xlu0 %1140
        %v1142 = vsub.f32 %v1133, %v1141
        %v1143 = vmul.f32 %v1142, 1.442695
        %v1144 = vpow.pop %v1143
        %v1145 = vsel %vm1138, %v1144, 0.0
        %1146 = vadd.xlane.f32.xlu0 %v1145
        %v1147 = vpop.xlane.xlu0 %1146
        %v1148 = vrcp.pop %v1147
        %v1149 = vmul.f32 %v1144, %v1148
        %v1150 = vpack.c.bf16 %v1149, %v1149
        %v1151 = vpack.c.bf16 %v1071, %v1071
        %v1152 = vpack.c.bf16 %v1073, %v1073
        %v1154 = vsel %vm1138, %v1150, 0
        %vm1156 = vcmask 1043456
        %v1158 = vsel %vm1156, %v1151, 0
        %v1161 = vsel %vm1156, %v1152, 0
        %1163 = vmatprep.subr.bf16.mxu0 %v1161
        %1164 = vmatpush1.bf16.msra.mxu0 %v1158
        %1165 = vmatprep.subr.bf16.mxu0 0
        %1166 = vmatpush1.bf16.msra.mxu0 0
        %1167 = vmatprep.subr.bf16.mxu0 0
        %1168 = vmatpush1.bf16.msra.mxu0 0
        %1169 = vmatprep.subr.bf16.mxu0 0
        %1170 = vmatpush1.bf16.msra.mxu0 0
        %1171 = vmatprep.subr.bf16.mxu0 0
        %1172 = vmatpush1.bf16.msra.mxu0 0
        %1173 = vmatprep.subr.bf16.mxu0 0
        %1174 = vmatpush1.bf16.msra.mxu0 0
        %1175 = vmatprep.subr.bf16.mxu0 0
        %1176 = vmatpush1.bf16.msra.mxu0 0
        %1177 = vmatprep.subr.bf16.mxu0 0
        %1178 = vmatpush1.bf16.msra.mxu0 0
        %1179 = vmatprep.subr.bf16.mxu0 0
        %1180 = vmatpush1.bf16.msra.mxu0 0
        %1181 = vmatprep.subr.bf16.mxu0 0
        %1182 = vmatpush1.bf16.msra.mxu0 0
        %1183 = vmatprep.subr.bf16.mxu0 0
        %1184 = vmatpush1.bf16.msra.mxu0 0
        %1185 = vmatprep.subr.bf16.mxu0 0
        %1186 = vmatpush1.bf16.msra.mxu0 0
        %1187 = vmatprep.subr.bf16.mxu0 0
        %1188 = vmatpush1.bf16.msra.mxu0 0
        %1189 = vmatprep.subr.bf16.mxu0 0
        %1190 = vmatpush1.bf16.msra.mxu0 0
        %1191 = vmatprep.subr.bf16.mxu0 0
        %1192 = vmatpush1.bf16.msra.mxu0 0
        %1193 = vmatprep.subr.bf16.mxu0 0
        %1194 = vmatpush1.bf16.msra.mxu0 0
        %1195 = vmatprep.mubr.bf16.mxu0 0
        %1196 = vmatmul.mubr.bf16.gmra.mrb[0].mxu0 %v1154
        %v1197 = vpop.f32.mrb[0].mxu0
        %v1198 = vadd.f32 0.0, %v1197
        %v1199 = vpop.f32.mrb[0].mxu0
        %v1200 = vadd.f32 0.0, %v1199
        %v1201 = vpop.f32.mrb[0].mxu0
        %v1202 = vpop.f32.mrb[0].mxu0
        %1203 = vdwg.mxu0
        %v1204 = vadd.f32 %v1198, %v1200
        %1205 = vadd.xlane.f32.xlu0 %v1204
        %v1206 = vpop.xlane.xlu0 %1205
        %v1207 = vrcp.pop 256.0
        %v1208 = vmul.f32 %v1206, %v1207
        %v1209 = vsub.f32 %v1198, %v1208
        %v1210 = vsub.f32 %v1200, %v1208
        %v1211 = vmul.f32 %v1209, %v1209
        %v1212 = vmul.f32 %v1210, %v1210
        %v1213 = vadd.f32 %v1211, %v1212
        %1214 = vadd.xlane.f32.xlu0 %v1213
        %v1215 = vpop.xlane.xlu0 %1214
        %v1216 = vmul.f32 %v1215, %v1207
        %v1217 = vadd.f32 %v1216, 1e-05
        %v1218 = vrsqrt.pop %v1217
        %v1219 = vmul.f32 %v1209, %v1218
        %v1220 = vmul.f32 %v1210, %v1218
        %v1221 = vld [vmem:[%s5] sm:$0x3]
        %v1223 = vlaneseq
        %v1224 = vshrl.u32 %v1223, 7
        %v1225 = vsub.s32 0, %v1224
        %v1226 = vrot.slane %v1221, %v1225
        %v1227 = vlaneseq
        %v1228 = vshrl.u32 %v1227, 7
        %v1229 = vsub.s32 1, %v1228
        %v1230 = vrot.slane %v1221, %v1229
        %v1233 = vmul.f32 %v1219, %v1226
        %v1234 = vmul.f32 %v1220, %v1230
        %v1235 = vld [vmem:[%s6] sm:$0x3]
        %v1237 = vlaneseq
        %v1238 = vshrl.u32 %v1237, 7
        %v1239 = vsub.s32 0, %v1238
        %v1240 = vrot.slane %v1235, %v1239
        %v1241 = vlaneseq
        %v1242 = vshrl.u32 %v1241, 7
        %v1243 = vsub.s32 1, %v1242
        %v1244 = vrot.slane %v1235, %v1243
        %v1247 = vadd.f32 %v1233, %v1240
        %v1248 = vadd.f32 %v1234, %v1244
        %v1249 = vmax.f32 %v1247, 0.0
        %v1250 = vmax.f32 %v1248, 0.0
        %1251 = vst [vmem:[%s333] sm:$0xff] %v1249
        %1252 = vst [vmem:[%s333 + $0x8] sm:$0xff] %v1250
        %s1253 = sand.u32 %s195, 1
        %s1254 = scalar_lea.sflag [#allocation4], %s1253
        %s1255 = sand.u32 %s195, 1
        %s1256 = smul.addr %s1255, 16
        %s1257 = scalar_lea.vmem [#allocation7], %s1256
        // Predicated region
        $region57: #{global_attention_layer.1} parent=47 // pred_check
          %p1258 = pneg %p205
        $region58: #{global_attention_layer.1} parent=47 // pred_check_branch
          %1260 = sbr.rel (%p1258) target = $region60
        $region59: #{global_attention_layer.1} parent=47 // pred_region
          %s1262 = ssub.s32 256, 256
          %1263 = vsyncadd %s1254, %s1262
          %s1264 = smul.addr %s25, 2
          %s1265 = smul.addr %s1264, 128
          %s1266 = scalar_lea.hbm %s7, %s1265
          %s1268 = sshll.u32 %s1257, 4
          %s1269 = int_to_ptr.vmem [resolvable:$true] %s1268
          %1271 = dma.vmem_to_hbm [thread:$0]  %s1269, 256, %s1266, %s1254
        $region60: #{global_attention_layer.1} parent=47 // pred_fallthru
          _
      $region48: #{global_attention_layer.1} parent=5 // pred_fallthru
        _
      %p1272 = scmp.le.s32.totalorder 2, %s20
      // Predicated region
      $region61: #{global_attention_layer.1} parent=5 // pred_check
        %p1273 = pneg %p1272
      $region62: #{global_attention_layer.1} parent=5 // pred_check_branch
        %1275 = sbr.rel (%p1273) target = $region64
      $region63: #{global_attention_layer.1} parent=5 // pred_region
        %s1276 = ssub.s32 %s20, 2
        // Predicated region
        $region65: #{global_attention_layer.1} parent=63 // pred_check
          %p1277 = pneg %p211
        $region66: #{global_attention_layer.1} parent=63 // pred_check_branch
          %1279 = sbr.rel (%p1277) target = $region68
        $region67: #{global_attention_layer.1} parent=63 // pred_region
          %s1280 = sand.u32 %s196, 1
          %s1281 = scalar_lea.sflag [#allocation4], %s1280
          %s1282 = sand.u32 %s196, 1
          %s1283 = smul.addr %s1282, 16
          %s1284 = scalar_lea.vmem [#allocation7], %s1283
          %1285 = dma.done %s1281, 256
        $region68: #{global_attention_layer.1} parent=63 // pred_fallthru
          _
      $region64: #{global_attention_layer.1} parent=5 // pred_fallthru
        _
    $region6: #{global_attention_layer.1} parent=1 // loop_footer
      %s24 = sadd.s32 1, %s20
    $region7: #{global_attention_layer.1} parent=1 // loop_footer_branch
      %19 = sbr.rel target = $region3
    $region8: #{global_attention_layer.1} parent=1 // loop_exit
      _
    %1286 = vsyncpa [#allocation3], 1
    %s1287 = scalar_lea.sflag [#allocation3], 1
    %1288 = vsyncpa %s1287, 1
    %1289 = vsyncpa [#allocation6], 1
    %1290 = vsyncpa [#allocation4], 1
    %s1291 = scalar_lea.sflag [#allocation4], 1
    %1292 = vsyncpa %s1291, 1

</llo_original>
